<compile_context>
chip_gen: v6e
topology: v6e:2x2x1
jax: 0.10.0
libtpu: 0.0.40
codegen_flags: <defaults>
</compile_context>

<pallas_src>
import functools

import jax
import jax.numpy as jnp
from jax.experimental import pallas as pl
from jax.experimental.pallas import tpu as pltpu


def _round_up(x: int, m: int) -> int:
    return (x + m - 1) // m * m


def _inverse_model_kernel(s_ref, ns_ref,
                          w1a_ref, w1b_ref, b1_ref,
                          w2_ref, b2_ref,
                          w3_ref, b3_ref,
                          out_ref):
    bf16 = jnp.bfloat16

    # Layer 1: Linear(2F, 128) as two MXU matmuls into one f32 accumulator
    # (split W1 -> no lane-axis concat). Inputs arrive f32 and are cast to
    # bf16 here (no wrapper-side cast/copy).
    h1 = jnp.dot(s_ref[...].astype(bf16), w1a_ref[...],
                 preferred_element_type=jnp.float32)
    h1 = h1 + jnp.dot(ns_ref[...].astype(bf16), w1b_ref[...],
                      preferred_element_type=jnp.float32)
    h1 = jnp.maximum(h1 + b1_ref[...], 0.0)

    # Layer 2: Linear(128, 128) + ReLU
    h2 = jnp.dot(h1.astype(bf16), w2_ref[...],
                 preferred_element_type=jnp.float32)
    h2 = jnp.maximum(h2 + b2_ref[...], 0.0)

    # Policy head: Linear(128, A) — narrow output, written unpadded.
    out = jnp.dot(h2.astype(bf16), w3_ref[...],
                  preferred_element_type=jnp.float32) + b3_ref[...]
    out_ref[...] = out.astype(out_ref.dtype)


def prepare_params(params):
    """One-time parameter prep (hoisted out of the per-call path).

    Splits W1 along its input (concat) axis into state / next_state halves,
    casts matmul operands to bf16, and reshapes PyTorch-style (H,) biases to
    (1, H) f32 rows.
    """
    bf16 = jnp.bfloat16
    f32 = jnp.float32
    w1 = jnp.asarray(params["w1"])
    F = w1.shape[0] // 2

    def bias(b):
        return jnp.asarray(b, f32).reshape(1, -1)

    return {
        "w1a": w1[:F].astype(bf16),
        "w1b": w1[F:].astype(bf16),
        "w2": jnp.asarray(params["w2"]).astype(bf16),
        "w3": jnp.asarray(params["w3"]).astype(bf16),
        "b1": bias(params["b1"]),
        "b2": bias(params["b2"]),
        "b3": bias(params["b3"]),
    }


@functools.partial(jax.jit, static_argnames=("block_b",))
def inverse_model_forward(state_latent, next_state_latent, prepared, *, block_b=2048):
    """Pallas-backed forward pass of InverseModel.

    state_latent, next_state_latent: (B, F) float32
    prepared: output of prepare_params()
    returns: (B, A) float32 action logits
    """
    B, F = state_latent.shape
    H = prepared["w2"].shape[0]           # 128
    A = prepared["w3"].shape[1]

    # ---- batch tiling: sublane-aligned, partial last block via cdiv ----
    TB = min(block_b, _round_up(B, 8))
    # Keep >= MIN_STEPS grid steps when the batch is big enough so the
    # 'parallel' axis shards across both TensorCores on v7x megacore.
    MIN_STEPS = 4
    if B >= MIN_STEPS * 8:
        TB = min(TB, _round_up(pl.cdiv(B, MIN_STEPS), 8))
    TB = max(TB, 8)
    grid = (pl.cdiv(B, TB),)

    batch_spec = lambda shape: pl.BlockSpec(shape, lambda i: (i, 0))
    const_spec = lambda shape: pl.BlockSpec(shape, lambda i: (0, 0))

    flops = 2 * B * (2 * F * H + H * H + H * A)
    bytes_accessed = (
        2 * B * F * 4                                   # s, ns (f32, read once)
        + (2 * F * H + H * H + H * A) * 2               # weights (bf16)
        + (2 * H + A) * 4                               # biases (f32)
        + B * A * 4                                     # output (f32, unpadded)
    )

    return pl.pallas_call(
        _inverse_model_kernel,
        out_shape=jax.ShapeDtypeStruct((B, A), jnp.float32),
        grid=grid,
        in_specs=[
            batch_spec((TB, F)),            # state_latent tile (f32)
            batch_spec((TB, F)),            # next_state_latent tile (f32)
            const_spec((F, H)),             # w1a  (VMEM-resident)
            const_spec((F, H)),             # w1b
            const_spec((1, H)),             # b1
            const_spec((H, H)),             # w2
            const_spec((1, H)),             # b2
            const_spec((H, A)),             # w3 (unpadded; A == full last dim)
            const_spec((1, A)),             # b3
        ],
        out_specs=batch_spec((TB, A)),
        compiler_params=pltpu.CompilerParams(
            dimension_semantics=("parallel",)),
        cost_estimate=pl.CostEstimate(
            flops=flops, transcendentals=0, bytes_accessed=bytes_accessed),
    )(state_latent, next_state_latent,
      prepared["w1a"], prepared["w1b"], prepared["b1"],
      prepared["w2"], prepared["b2"],
      prepared["w3"], prepared["b3"])


def init_params(key, state_latent_features, n_actions, hidden=128):
    """Deterministic PyTorch-Linear-style init: U(-1/sqrt(fan_in), 1/sqrt(fan_in))."""
    def linear(key, fan_in, fan_out):
        kw, kb = jax.random.split(key)
        bound = 1.0 / jnp.sqrt(fan_in)
        w = jax.random.uniform(kw, (fan_in, fan_out), jnp.float32, -bound, bound)
        b = jax.random.uniform(kb, (1, fan_out), jnp.float32, -bound, bound)
        return w, b

    k1, k2, k3 = jax.random.split(key, 3)
    w1, b1 = linear(k1, state_latent_features * 2, hidden)
    w2, b2 = linear(k2, hidden, hidden)
    w3, b3 = linear(k3, hidden, n_actions)
    return {"w1": w1, "b1": b1, "w2": w2, "b2": b2, "w3": w3, "b3": b3}


def _reference_forward_f32(state_latent, next_state_latent, params):
    """Pure-JAX f32 reference matching the PyTorch module exactly."""
    x = jnp.concatenate([state_latent, next_state_latent], axis=-1)
    h1 = jnp.maximum(x @ params["w1"] + params["b1"], 0.0)
    h2 = jnp.maximum(h1 @ params["w2"] + params["b2"], 0.0)
    return h2 @ params["w3"] + params["b3"]


def _reference_forward_bf16(state_latent, next_state_latent, params):
    """Reference using the same bf16-operand / f32-accumulate formulation as the kernel."""
    bf16 = jnp.bfloat16
    F = state_latent.shape[-1]
    s = state_latent.astype(bf16)
    ns = next_state_latent.astype(bf16)
    w1a = params["w1"][:F].astype(bf16)
    w1b = params["w1"][F:].astype(bf16)
    h1 = (jnp.dot(s, w1a, preferred_element_type=jnp.float32)
          + jnp.dot(ns, w1b, preferred_element_type=jnp.float32))
    h1 = jnp.maximum(h1 + params["b1"], 0.0)
    h2 = jnp.dot(h1.astype(bf16), params["w2"].astype(bf16),
                 preferred_element_type=jnp.float32)
    h2 = jnp.maximum(h2 + params["b2"], 0.0)
    return jnp.dot(h2.astype(bf16), params["w3"].astype(bf16),
                   preferred_element_type=jnp.float32) + params["b3"]


if __name__ == "__main__":
    B = 8                        # batch
    F = 32                       # state_latent_features
    A = 4                        # n_actions from the action converter head

    key = jax.random.PRNGKey(0)
    k_params, k_s, k_ns = jax.random.split(key, 3)

    params = init_params(k_params, state_latent_features=F, n_actions=A)
    prepared = prepare_params(params)        # one-time: split W1, cast, reshape biases
    state_latent = jax.random.normal(k_s, (B, F), jnp.float32)
    next_state_latent = jax.random.normal(k_ns, (B, F), jnp.float32)

    out = inverse_model_forward(state_latent, next_state_latent, prepared)
    out = jax.block_until_ready(out)
    assert out.shape == (B, A), out.shape

    # Same math as the kernel (bf16 operands, f32 accumulation): should be very close.
    ref_bf16 = _reference_forward_bf16(state_latent, next_state_latent, params)
    assert jnp.allclose(out, ref_bf16, atol=1e-3, rtol=1e-3), "mismatch vs bf16-matched reference"

    # PyTorch-exact f32 reference: agreement up to bf16 operand rounding.
    ref_f32 = _reference_forward_f32(state_latent, next_state_latent, params)
    assert jnp.allclose(out, ref_f32, atol=5e-2, rtol=5e-2), "mismatch vs f32 reference"

    # Exercise a partial last block + multi-step grid path too (B not a tile multiple).
    B2 = 100
    k_s2, k_ns2 = jax.random.split(jax.random.PRNGKey(1))
    s2 = jax.random.normal(k_s2, (B2, F), jnp.float32)
    ns2 = jax.random.normal(k_ns2, (B2, F), jnp.float32)
    out2 = jax.block_until_ready(inverse_model_forward(s2, ns2, prepared, block_b=64))
    ref2 = _reference_forward_bf16(s2, ns2, params)
    assert out2.shape == (B2, A)
    assert jnp.allclose(out2, ref2, atol=1e-3, rtol=1e-3), "mismatch on partial-block batch"

    print("KERNEL_OK")
</pallas_src>

<mosaic_0001>
module attributes {stable_mosaic.version = 11 : i64} {
  func.func @_inverse_model_kernel(%arg0: i32, %arg1: memref<8x32xf32, #tpu.memory_space<vmem>>, %arg2: memref<8x32xf32, #tpu.memory_space<vmem>>, %arg3: memref<32x128xbf16, #tpu.memory_space<vmem>>, %arg4: memref<32x128xbf16, #tpu.memory_space<vmem>>, %arg5: memref<1x128xf32, #tpu.memory_space<vmem>>, %arg6: memref<128x128xbf16, #tpu.memory_space<vmem>>, %arg7: memref<1x128xf32, #tpu.memory_space<vmem>>, %arg8: memref<128x4xbf16, #tpu.memory_space<vmem>>, %arg9: memref<1x4xf32, #tpu.memory_space<vmem>>, %arg10: memref<8x4xf32, #tpu.memory_space<vmem>>) attributes {dimension_semantics = [#tpu.dimension_semantics<parallel>], iteration_bounds = array<i64: 1>, scalar_prefetch = 0 : i64, scratch_operands = 0 : i64, tpu.core_type = #tpu.core_type<tc>, window_params = [{transform_indices = @transform_0, window_bounds = array<i64: 8, 32>}, {transform_indices = @transform_1, window_bounds = array<i64: 8, 32>}, {pipeline_mode = #tpu.pipeline_mode<synchronous>, transform_indices = @transform_2, window_bounds = array<i64: 32, 128>}, {pipeline_mode = #tpu.pipeline_mode<synchronous>, transform_indices = @transform_3, window_bounds = array<i64: 32, 128>}, {pipeline_mode = #tpu.pipeline_mode<synchronous>, transform_indices = @transform_4, window_bounds = array<i64: 1, 128>}, {pipeline_mode = #tpu.pipeline_mode<synchronous>, transform_indices = @transform_5, window_bounds = array<i64: 128, 128>}, {pipeline_mode = #tpu.pipeline_mode<synchronous>, transform_indices = @transform_6, window_bounds = array<i64: 1, 128>}, {pipeline_mode = #tpu.pipeline_mode<synchronous>, transform_indices = @transform_7, window_bounds = array<i64: 128, 4>}, {pipeline_mode = #tpu.pipeline_mode<synchronous>, transform_indices = @transform_8, window_bounds = array<i64: 1, 4>}, {transform_indices = @transform_9, window_bounds = array<i64: 8, 4>}]} {
    %c0 = arith.constant 0 : index
    %c0_0 = arith.constant 0 : index
    %0 = vector.load %arg1[%c0, %c0_0] : memref<8x32xf32, #tpu.memory_space<vmem>>, vector<8x32xf32>
    %1 = arith.truncf %0 : vector<8x32xf32> to vector<8x32xbf16>
    %c0_1 = arith.constant 0 : index
    %c0_2 = arith.constant 0 : index
    %2 = vector.load %arg3[%c0_1, %c0_2] : memref<32x128xbf16, #tpu.memory_space<vmem>>, vector<32x128xbf16>
    %cst = arith.constant dense<0.000000e+00> : vector<8x128xf32>
    %3 = tpu.matmul %1, %2, %cst {dimension_numbers = #tpu.dot_dimension_numbers<[1], [0], [0], [1], [0, 0, 1, 1], [], []>} : vector<8x32xbf16>, vector<32x128xbf16>, vector<8x128xf32> -> vector<8x128xf32>
    %c0_3 = arith.constant 0 : index
    %c0_4 = arith.constant 0 : index
    %4 = vector.load %arg2[%c0_3, %c0_4] : memref<8x32xf32, #tpu.memory_space<vmem>>, vector<8x32xf32>
    %5 = arith.truncf %4 : vector<8x32xf32> to vector<8x32xbf16>
    %c0_5 = arith.constant 0 : index
    %c0_6 = arith.constant 0 : index
    %6 = vector.load %arg4[%c0_5, %c0_6] : memref<32x128xbf16, #tpu.memory_space<vmem>>, vector<32x128xbf16>
    %cst_7 = arith.constant dense<0.000000e+00> : vector<8x128xf32>
    %7 = tpu.matmul %5, %6, %cst_7 {dimension_numbers = #tpu.dot_dimension_numbers<[1], [0], [0], [1], [0, 0, 1, 1], [], []>} : vector<8x32xbf16>, vector<32x128xbf16>, vector<8x128xf32> -> vector<8x128xf32>
    %8 = arith.addf %3, %7 : vector<8x128xf32>
    %c0_8 = arith.constant 0 : index
    %c0_9 = arith.constant 0 : index
    %9 = vector.load %arg5[%c0_8, %c0_9] : memref<1x128xf32, #tpu.memory_space<vmem>>, vector<1x128xf32>
    %10 = vector.broadcast %9 : vector<1x128xf32> to vector<8x128xf32>
    %11 = arith.addf %8, %10 : vector<8x128xf32>
    %cst_10 = arith.constant 0.000000e+00 : f32
    %12 = vector.broadcast %cst_10 : f32 to vector<8x128xf32>
    %13 = arith.maximumf %11, %12 : vector<8x128xf32>
    %14 = arith.truncf %13 : vector<8x128xf32> to vector<8x128xbf16>
    %c0_11 = arith.constant 0 : index
    %c0_12 = arith.constant 0 : index
    %15 = vector.load %arg6[%c0_11, %c0_12] : memref<128x128xbf16, #tpu.memory_space<vmem>>, vector<128x128xbf16>
    %cst_13 = arith.constant dense<0.000000e+00> : vector<8x128xf32>
    %16 = tpu.matmul %14, %15, %cst_13 {dimension_numbers = #tpu.dot_dimension_numbers<[1], [0], [0], [1], [0, 0, 1, 1], [], []>} : vector<8x128xbf16>, vector<128x128xbf16>, vector<8x128xf32> -> vector<8x128xf32>
    %c0_14 = arith.constant 0 : index
    %c0_15 = arith.constant 0 : index
    %17 = vector.load %arg7[%c0_14, %c0_15] : memref<1x128xf32, #tpu.memory_space<vmem>>, vector<1x128xf32>
    %18 = vector.broadcast %17 : vector<1x128xf32> to vector<8x128xf32>
    %19 = arith.addf %16, %18 : vector<8x128xf32>
    %cst_16 = arith.constant 0.000000e+00 : f32
    %20 = vector.broadcast %cst_16 : f32 to vector<8x128xf32>
    %21 = arith.maximumf %19, %20 : vector<8x128xf32>
    %22 = arith.truncf %21 : vector<8x128xf32> to vector<8x128xbf16>
    %c0_17 = arith.constant 0 : index
    %c0_18 = arith.constant 0 : index
    %23 = vector.load %arg8[%c0_17, %c0_18] : memref<128x4xbf16, #tpu.memory_space<vmem>>, vector<128x4xbf16>
    %cst_19 = arith.constant dense<0.000000e+00> : vector<8x4xf32>
    %24 = tpu.matmul %22, %23, %cst_19 {dimension_numbers = #tpu.dot_dimension_numbers<[1], [0], [0], [1], [0, 0, 1, 1], [], []>} : vector<8x128xbf16>, vector<128x4xbf16>, vector<8x4xf32> -> vector<8x4xf32>
    %c0_20 = arith.constant 0 : index
    %c0_21 = arith.constant 0 : index
    %25 = vector.load %arg9[%c0_20, %c0_21] : memref<1x4xf32, #tpu.memory_space<vmem>>, vector<1x4xf32>
    %26 = vector.broadcast %25 : vector<1x4xf32> to vector<8x4xf32>
    %27 = arith.addf %24, %26 : vector<8x4xf32>
    %c0_22 = arith.constant 0 : index
    %c0_23 = arith.constant 0 : index
    %28 = vector.load %arg10[%c0_22, %c0_23] : memref<8x4xf32, #tpu.memory_space<vmem>>, vector<8x4xf32>
    tpu.vector_store %arg10[%c0_22, %c0_23], %27 {strides = array<i32>} : memref<8x4xf32, #tpu.memory_space<vmem>>, vector<8x4xf32>,
    return
  }
  func.func @transform_0(%arg0: i32) -> (i32, i32) {
    %c0_i32 = arith.constant 0 : i32
    %c0_i32_0 = arith.constant 0 : i32
    return %arg0, %c0_i32 : i32, i32
  }
  func.func @transform_1(%arg0: i32) -> (i32, i32) {
    %c0_i32 = arith.constant 0 : i32
    %c0_i32_0 = arith.constant 0 : i32
    return %arg0, %c0_i32 : i32, i32
  }
  func.func @transform_2(%arg0: i32) -> (i32, i32) {
    %c0_i32 = arith.constant 0 : i32
    %c0_i32_0 = arith.constant 0 : i32
    %c0_i32_1 = arith.constant 0 : i32
    return %c0_i32, %c0_i32_0 : i32, i32
  }
  func.func @transform_3(%arg0: i32) -> (i32, i32) {
    %c0_i32 = arith.constant 0 : i32
    %c0_i32_0 = arith.constant 0 : i32
    %c0_i32_1 = arith.constant 0 : i32
    return %c0_i32, %c0_i32_0 : i32, i32
  }
  func.func @transform_4(%arg0: i32) -> (i32, i32) {
    %c0_i32 = arith.constant 0 : i32
    %c0_i32_0 = arith.constant 0 : i32
    %c0_i32_1 = arith.constant 0 : i32
    return %c0_i32, %c0_i32_0 : i32, i32
  }
  func.func @transform_5(%arg0: i32) -> (i32, i32) {
    %c0_i32 = arith.constant 0 : i32
    %c0_i32_0 = arith.constant 0 : i32
    %c0_i32_1 = arith.constant 0 : i32
    return %c0_i32, %c0_i32_0 : i32, i32
  }
  func.func @transform_6(%arg0: i32) -> (i32, i32) {
    %c0_i32 = arith.constant 0 : i32
    %c0_i32_0 = arith.constant 0 : i32
    %c0_i32_1 = arith.constant 0 : i32
    return %c0_i32, %c0_i32_0 : i32, i32
  }
  func.func @transform_7(%arg0: i32) -> (i32, i32) {
    %c0_i32 = arith.constant 0 : i32
    %c0_i32_0 = arith.constant 0 : i32
    %c0_i32_1 = arith.constant 0 : i32
    return %c0_i32, %c0_i32_0 : i32, i32
  }
  func.func @transform_8(%arg0: i32) -> (i32, i32) {
    %c0_i32 = arith.constant 0 : i32
    %c0_i32_0 = arith.constant 0 : i32
    %c0_i32_1 = arith.constant 0 : i32
    return %c0_i32, %c0_i32_0 : i32, i32
  }
  func.func @transform_9(%arg0: i32) -> (i32, i32) {
    %c0_i32 = arith.constant 0 : i32
    %c0_i32_0 = arith.constant 0 : i32
    return %arg0, %c0_i32 : i32, i32
  }
}

</mosaic_0001>

<llo_original>
// kernel: inverse_model_forward.1
$region0: #{inverse_model_forward.1}
  #allocation0 [shape = 'u32[]', space=smem, size = 0x4, offset = 0x4, fixed_abs, tag = 'smem constant byte address 0x4 - core index']
  #allocation1 [shape = 'u32[144,128]{1,0:T(1,128)}', space=vmem, size = 0x12000, scoped, tag = 'internal scratch']
  %s0 = inlined_call_operand.vmem [shape: f32[8,32], index: 0, kind: input, shape index: {}]
  %s1 = inlined_call_operand.hbm [shape: f32[8,32], index: 1, kind: input, shape index: {}]
  %s2 = inlined_call_operand.hbm [shape: bf16[32,128], index: 2, kind: input, shape index: {}]
  %s3 = inlined_call_operand.hbm [shape: bf16[32,128], index: 3, kind: input, shape index: {}]
  %s4 = inlined_call_operand.vmem [shape: f32[1,128], index: 4, kind: input, shape index: {}]
  %s5 = inlined_call_operand.vmem [shape: bf16[128,128], index: 5, kind: input, shape index: {}]
  %s6 = inlined_call_operand.vmem [shape: f32[1,128], index: 6, kind: input, shape index: {}]
  %s7 = inlined_call_operand.vmem [shape: bf16[128,4], index: 7, kind: input, shape index: {}]
  %s8 = inlined_call_operand.vmem [shape: f32[1,4], index: 8, kind: input, shape index: {}]
  %s9 = inlined_call_operand.vmem [shape: f32[8,4], index: 9, kind: output, shape index: {}]
  %s10 = sld [smem:[#allocation0]]
  $region58: #{inverse_model_forward.1} parent=0
    _
  %s12 = ssub.s32 1, %s10
  %s13 = scalar_select 0, %s12, %s10
  $region1: #{inverse_model_forward.1} parent=0
    #allocation2 [shape = 'u8[4096]{0}', space=vmem, size = 0x1000, scoped, tag = 'input window, operand 1, single buffered']
    #allocation3 [shape = 's32[1]{0}', space=sflag, size = 0x4, scoped, tag = 'scoped memory for inverse_model_forward.1']
    #allocation4 [shape = 'u8[8192]{0}', space=vmem, size = 0x2000, scoped, tag = 'input window, operand 2, single buffered']
    #allocation5 [shape = 's32[1]{0}', space=sflag, size = 0x4, scoped, tag = 'scoped memory for inverse_model_forward.1']
    #allocation6 [shape = 'u8[8192]{0}', space=vmem, size = 0x2000, scoped, tag = 'input window, operand 3, single buffered']
    %14 = vsyncpa [#allocation3], 0
    %15 = vsyncpa [#allocation5], 0
    // Predicated region
    $region2: #{inverse_model_forward.1} parent=1 // pred_check
      _
    $region3: #{inverse_model_forward.1} parent=1 // pred_check_branch
      %17 = sbr.rel (0) target = $region5
    $region4: #{inverse_model_forward.1} parent=1 // pred_region
      _
    $region5: #{inverse_model_forward.1} parent=1 // pred_fallthru
      _
    // Predicated region
    $region6: #{inverse_model_forward.1} parent=1 // pred_check
      _
    $region7: #{inverse_model_forward.1} parent=1 // pred_check_branch
      %19 = sbr.rel (0) target = $region9
    $region8: #{inverse_model_forward.1} parent=1 // pred_region
      %s21 = ssub.s32 128, 128
      %22 = vsyncadd [#allocation3], %s21
      %s24 = sshll.u32 [#allocation2], 4
      %s25 = int_to_ptr.vmem [resolvable:$true] %s24
      %27 = dma.hbm_to_vmem [thread:$0]  %s1, 128, %s25, [#allocation3]
    $region9: #{inverse_model_forward.1} parent=1 // pred_fallthru
      _
    // Predicated region
    $region10: #{inverse_model_forward.1} parent=1 // pred_check
      _
    $region11: #{inverse_model_forward.1} parent=1 // pred_check_branch
      %29 = sbr.rel (0) target = $region13
    $region12: #{inverse_model_forward.1} parent=1 // pred_region
      %s31 = ssub.s32 256, 256
      %32 = vsyncadd [#allocation5], %s31
      %s33 = sshll.u32 [#allocation4], 4
      %s34 = int_to_ptr.vmem [resolvable:$true] %s33
      %39 = dma.hbm_to_vmem [thread:$0]  %s2, 256, %s34, [#allocation5], 64, 64, 4
    $region13: #{inverse_model_forward.1} parent=1 // pred_fallthru
      _
    // Predicated region
    $region14: #{inverse_model_forward.1} parent=1 // pred_check
      _
    $region15: #{inverse_model_forward.1} parent=1 // pred_check_branch
      %41 = sbr.rel (0) target = $region17
    $region16: #{inverse_model_forward.1} parent=1 // pred_region
      %s43 = ssub.s32 256, 256
      %44 = vsyncadd [#allocation5], %s43
      %s45 = sshll.u32 [#allocation6], 4
      %s46 = int_to_ptr.vmem [resolvable:$true] %s45
      %51 = dma.hbm_to_vmem [thread:$0]  %s3, 256, %s46, [#allocation5], 64, 64, 4
    $region17: #{inverse_model_forward.1} parent=1 // pred_fallthru
      _
    // Predicated region
    $region18: #{inverse_model_forward.1} parent=1 // pred_check
      _
    $region19: #{inverse_model_forward.1} parent=1 // pred_check_branch
      %53 = sbr.rel (0) target = $region21
    $region20: #{inverse_model_forward.1} parent=1 // pred_region
      _
    $region21: #{inverse_model_forward.1} parent=1 // pred_fallthru
      _
    // Predicated region
    $region22: #{inverse_model_forward.1} parent=1 // pred_check
      _
    $region23: #{inverse_model_forward.1} parent=1 // pred_check_branch
      %55 = sbr.rel (0) target = $region25
    $region24: #{inverse_model_forward.1} parent=1 // pred_region
      _
    $region25: #{inverse_model_forward.1} parent=1 // pred_fallthru
      _
    // Predicated region
    $region26: #{inverse_model_forward.1} parent=1 // pred_check
      _
    $region27: #{inverse_model_forward.1} parent=1 // pred_check_branch
      %57 = sbr.rel (0) target = $region29
    $region28: #{inverse_model_forward.1} parent=1 // pred_region
      _
    $region29: #{inverse_model_forward.1} parent=1 // pred_fallthru
      _
    // Predicated region
    $region30: #{inverse_model_forward.1} parent=1 // pred_check
      _
    $region31: #{inverse_model_forward.1} parent=1 // pred_check_branch
      %59 = sbr.rel (0) target = $region33
    $region32: #{inverse_model_forward.1} parent=1 // pred_region
      _
    $region33: #{inverse_model_forward.1} parent=1 // pred_fallthru
      _
    // Predicated region
    $region34: #{inverse_model_forward.1} parent=1 // pred_check
      _
    $region35: #{inverse_model_forward.1} parent=1 // pred_check_branch
      %61 = sbr.rel (0) target = $region37
    $region36: #{inverse_model_forward.1} parent=1 // pred_region
      _
    $region37: #{inverse_model_forward.1} parent=1 // pred_fallthru
      _
    // Predicated region
    $region38: #{inverse_model_forward.1} parent=1 // pred_check
      _
    $region39: #{inverse_model_forward.1} parent=1 // pred_check_branch
      %63 = sbr.rel (0) target = $region41
    $region40: #{inverse_model_forward.1} parent=1 // pred_region
      %64 = dma.done [#allocation3], 128
    $region41: #{inverse_model_forward.1} parent=1 // pred_fallthru
      _
    // Predicated region
    $region42: #{inverse_model_forward.1} parent=1 // pred_check
      _
    $region43: #{inverse_model_forward.1} parent=1 // pred_check_branch
      %66 = sbr.rel (0) target = $region45
    $region44: #{inverse_model_forward.1} parent=1 // pred_region
      %67 = dma.done [#allocation5], 256
    $region45: #{inverse_model_forward.1} parent=1 // pred_fallthru
      _
    // Predicated region
    $region46: #{inverse_model_forward.1} parent=1 // pred_check
      _
    $region47: #{inverse_model_forward.1} parent=1 // pred_check_branch
      %69 = sbr.rel (0) target = $region49
    $region48: #{inverse_model_forward.1} parent=1 // pred_region
      %70 = dma.done [#allocation5], 256
    $region49: #{inverse_model_forward.1} parent=1 // pred_fallthru
      _
    %v72 = vld [vmem:[%s0] sm:$0xff]
    %v73 = vpack.c.bf16 %v72, %v72
    %v74 = vld [vmem:[#allocation4] sm:$0xf]
    %v75 = vld [vmem:[#allocation4 + $0x4] sm:$0xf]
    %v76 = vld [vmem:[#allocation4 + $0x8] sm:$0xf]
    %v77 = vld [vmem:[#allocation4 + $0xc] sm:$0xf]
    %v78 = vld [vmem:[#allocation2] sm:$0xff]
    %v79 = vpack.c.bf16 %v78, %v78
    %v80 = vld [vmem:[#allocation6] sm:$0xf]
    %v81 = vld [vmem:[#allocation6 + $0x4] sm:$0xf]
    %v82 = vld [vmem:[#allocation6 + $0x8] sm:$0xf]
    %v83 = vld [vmem:[#allocation6 + $0xc] sm:$0xf]
    %v88 = vunpack.c.l.b16 %v80
    %v89 = vunpack.c.l.b16 %v81
    %v90 = vunpack.c.l.b16 %v82
    %v91 = vunpack.c.l.b16 %v83
    %v92 = vpack.c.b16 %v89, %v88
    %v93 = vpack.c.b16 %v91, %v90
    %vm96 = vcmask 261120
    %v98 = vsel %vm96, %v79, 0
    %100 = vmatprep.subr.bf16.mxu0 0
    %101 = vmatpush1.bf16.msra.mxu0 0
    %102 = vmatprep.subr.bf16.mxu0 0
    %103 = vmatpush1.bf16.msra.mxu0 0
    %104 = vmatprep.subr.bf16.mxu0 0
    %105 = vmatpush1.bf16.msra.mxu0 0
    %106 = vmatprep.subr.bf16.mxu0 0
    %107 = vmatpush1.bf16.msra.mxu0 0
    %108 = vmatprep.subr.bf16.mxu0 0
    %109 = vmatpush1.bf16.msra.mxu0 0
    %110 = vmatprep.subr.bf16.mxu0 0
    %111 = vmatpush1.bf16.msra.mxu0 0
    %112 = vmatprep.subr.bf16.mxu0 0
    %113 = vmatpush1.bf16.msra.mxu0 %v93
    %114 = vmatprep.subr.bf16.mxu0 0
    %115 = vmatpush1.bf16.msra.mxu0 %v92
    %116 = vmatprep.subr.bf16.mxu0 0
    %117 = vmatpush2.bf16.msra.mxu0 0
    %118 = vmatprep.subr.bf16.mxu0 0
    %119 = vmatpush2.bf16.msra.mxu0 0
    %120 = vmatprep.subr.bf16.mxu0 0
    %121 = vmatpush2.bf16.msra.mxu0 0
    %122 = vmatprep.subr.bf16.mxu0 0
    %123 = vmatpush2.bf16.msra.mxu0 0
    %124 = vmatprep.subr.bf16.mxu0 0
    %125 = vmatpush2.bf16.msra.mxu0 0
    %126 = vmatprep.subr.bf16.mxu0 0
    %127 = vmatpush2.bf16.msra.mxu0 0
    %128 = vmatprep.subr.bf16.mxu0 0
    %129 = vmatpush2.bf16.msra.mxu0 0
    %130 = vmatprep.subr.bf16.mxu0 0
    %131 = vmatpush2.bf16.msra.mxu0 0
    %132 = vmatprep.mubr.bf16.mxu0 0
    %133 = vmatmul.mubr.bf16.gmra.mxu0 %v98
    %v134 = vpop.f32.mrf.mxu0
    %v135 = vadd.f32 0.0, %v134
    %v136 = vpop.f32.mrf.mxu0
    %v137 = vpop.f32.mrf.mxu0
    %v138 = vpop.f32.mrf.mxu0
    %139 = vdwg.mxu0
    %v144 = vunpack.c.l.b16 %v74
    %v145 = vunpack.c.l.b16 %v75
    %v146 = vunpack.c.l.b16 %v76
    %v147 = vunpack.c.l.b16 %v77
    %v148 = vpack.c.b16 %v145, %v144
    %v149 = vpack.c.b16 %v147, %v146
    %v153 = vsel %vm96, %v73, 0
    %155 = vmatprep.subr.bf16.mxu0 0
    %156 = vmatpush1.bf16.msra.mxu0 0
    %157 = vmatprep.subr.bf16.mxu0 0
    %158 = vmatpush1.bf16.msra.mxu0 0
    %159 = vmatprep.subr.bf16.mxu0 0
    %160 = vmatpush1.bf16.msra.mxu0 0
    %161 = vmatprep.subr.bf16.mxu0 0
    %162 = vmatpush1.bf16.msra.mxu0 0
    %163 = vmatprep.subr.bf16.mxu0 0
    %164 = vmatpush1.bf16.msra.mxu0 0
    %165 = vmatprep.subr.bf16.mxu0 0
    %166 = vmatpush1.bf16.msra.mxu0 0
    %167 = vmatprep.subr.bf16.mxu0 0
    %168 = vmatpush1.bf16.msra.mxu0 %v149
    %169 = vmatprep.subr.bf16.mxu0 0
    %170 = vmatpush1.bf16.msra.mxu0 %v148
    %171 = vmatprep.subr.bf16.mxu0 0
    %172 = vmatpush2.bf16.msra.mxu0 0
    %173 = vmatprep.subr.bf16.mxu0 0
    %174 = vmatpush2.bf16.msra.mxu0 0
    %175 = vmatprep.subr.bf16.mxu0 0
    %176 = vmatpush2.bf16.msra.mxu0 0
    %177 = vmatprep.subr.bf16.mxu0 0
    %178 = vmatpush2.bf16.msra.mxu0 0
    %179 = vmatprep.subr.bf16.mxu0 0
    %180 = vmatpush2.bf16.msra.mxu0 0
    %181 = vmatprep.subr.bf16.mxu0 0
    %182 = vmatpush2.bf16.msra.mxu0 0
    %183 = vmatprep.subr.bf16.mxu0 0
    %184 = vmatpush2.bf16.msra.mxu0 0
    %185 = vmatprep.subr.bf16.mxu0 0
    %186 = vmatpush2.bf16.msra.mxu0 0
    %187 = vmatprep.mubr.bf16.mxu0 0
    %188 = vmatmul.mubr.bf16.gmra.mxu0 %v153
    %v189 = vpop.f32.mrf.mxu0
    %v190 = vadd.f32 %v135, %v189
    %v191 = vpop.f32.mrf.mxu0
    %v192 = vpop.f32.mrf.mxu0
    %v193 = vpop.f32.mrf.mxu0
    %194 = vdwg.mxu0
    %v195 = vld [vmem:[%s4] sm:$0x1]
    %v197 = vlaneseq
    %v198 = vshrl.u32 %v197, 7
    %v199 = vsub.s32 0, %v198
    %v200 = vrot.slane %v195, %v199
    %v202 = vadd.f32 %v190, %v200
    %v203 = vmax.f32 %v202, 0.0
    %v204 = vpack.c.bf16 %v203, %v203
    %v205 = vld [vmem:[%s5] sm:$0xf]
    %v206 = vld [vmem:[%s5 + $0x4] sm:$0xf]
    %v207 = vld [vmem:[%s5 + $0x8] sm:$0xf]
    %v208 = vld [vmem:[%s5 + $0xc] sm:$0xf]
    %v209 = vld [vmem:[%s5 + $0x10] sm:$0xf]
    %v210 = vld [vmem:[%s5 + $0x14] sm:$0xf]
    %v211 = vld [vmem:[%s5 + $0x18] sm:$0xf]
    %v212 = vld [vmem:[%s5 + $0x1c] sm:$0xf]
    %v213 = vld [vmem:[%s5 + $0x20] sm:$0xf]
    %v214 = vld [vmem:[%s5 + $0x24] sm:$0xf]
    %v215 = vld [vmem:[%s5 + $0x28] sm:$0xf]
    %v216 = vld [vmem:[%s5 + $0x2c] sm:$0xf]
    %v217 = vld [vmem:[%s5 + $0x30] sm:$0xf]
    %v218 = vld [vmem:[%s5 + $0x34] sm:$0xf]
    %v219 = vld [vmem:[%s5 + $0x38] sm:$0xf]
    %v220 = vld [vmem:[%s5 + $0x3c] sm:$0xf]
    %v221 = vld [vmem:[%s6] sm:$0x1]
    %v223 = vlaneseq
    %v224 = vshrl.u32 %v223, 7
    %v225 = vsub.s32 0, %v224
    %v226 = vrot.slane %v221, %v225
    %v244 = vunpack.c.l.b16 %v205
    %v245 = vunpack.c.l.b16 %v206
    %v246 = vunpack.c.l.b16 %v207
    %v247 = vunpack.c.l.b16 %v208
    %v248 = vunpack.c.l.b16 %v209
    %v249 = vunpack.c.l.b16 %v210
    %v250 = vunpack.c.l.b16 %v211
    %v251 = vunpack.c.l.b16 %v212
    %v252 = vunpack.c.l.b16 %v213
    %v253 = vunpack.c.l.b16 %v214
    %v254 = vunpack.c.l.b16 %v215
    %v255 = vunpack.c.l.b16 %v216
    %v256 = vunpack.c.l.b16 %v217
    %v257 = vunpack.c.l.b16 %v218
    %v258 = vunpack.c.l.b16 %v219
    %v259 = vunpack.c.l.b16 %v220
    %v260 = vpack.c.b16 %v245, %v244
    %v261 = vpack.c.b16 %v247, %v246
    %v262 = vpack.c.b16 %v249, %v248
    %v263 = vpack.c.b16 %v251, %v250
    %v264 = vpack.c.b16 %v253, %v252
    %v265 = vpack.c.b16 %v255, %v254
    %v266 = vpack.c.b16 %v257, %v256
    %v267 = vpack.c.b16 %v259, %v258
    %276 = vmatprep.subr.bf16.mxu0 0
    %277 = vmatpush1.bf16.msra.mxu0 %v267
    %278 = vmatprep.subr.bf16.mxu0 0
    %279 = vmatpush1.bf16.msra.mxu0 %v266
    %280 = vmatprep.subr.bf16.mxu0 0
    %281 = vmatpush1.bf16.msra.mxu0 %v265
    %282 = vmatprep.subr.bf16.mxu0 0
    %283 = vmatpush1.bf16.msra.mxu0 %v264
    %284 = vmatprep.subr.bf16.mxu0 0
    %285 = vmatpush1.bf16.msra.mxu0 %v263
    %286 = vmatprep.subr.bf16.mxu0 0
    %287 = vmatpush1.bf16.msra.mxu0 %v262
    %288 = vmatprep.subr.bf16.mxu0 0
    %289 = vmatpush1.bf16.msra.mxu0 %v261
    %290 = vmatprep.subr.bf16.mxu0 0
    %291 = vmatpush1.bf16.msra.mxu0 %v260
    %292 = vmatprep.subr.bf16.mxu0 0
    %293 = vmatpush2.bf16.msra.mxu0 0
    %294 = vmatprep.subr.bf16.mxu0 0
    %295 = vmatpush2.bf16.msra.mxu0 0
    %296 = vmatprep.subr.bf16.mxu0 0
    %297 = vmatpush2.bf16.msra.mxu0 0
    %298 = vmatprep.subr.bf16.mxu0 0
    %299 = vmatpush2.bf16.msra.mxu0 0
    %300 = vmatprep.subr.bf16.mxu0 0
    %301 = vmatpush2.bf16.msra.mxu0 0
    %302 = vmatprep.subr.bf16.mxu0 0
    %303 = vmatpush2.bf16.msra.mxu0 0
    %304 = vmatprep.subr.bf16.mxu0 0
    %305 = vmatpush2.bf16.msra.mxu0 0
    %306 = vmatprep.subr.bf16.mxu0 0
    %307 = vmatpush2.bf16.msra.mxu0 0
    %308 = vmatprep.mubr.bf16.mxu0 0
    %309 = vmatmul.mubr.bf16.gmra.mxu0 %v204
    %v310 = vpop.f32.mrf.mxu0
    %v311 = vadd.f32 %v226, %v310
    %v312 = vpop.f32.mrf.mxu0
    %v313 = vpop.f32.mrf.mxu0
    %v314 = vpop.f32.mrf.mxu0
    %315 = vdwg.mxu0
    %v316 = vmax.f32 %v311, 0.0
    %v317 = vpack.c.bf16 %v316, %v316
    %v318 = vld [vmem:[%s7] sm:$0xf]
    %v319 = vld [vmem:[%s7 + $0x4] sm:$0xf]
    %v320 = vld [vmem:[%s7 + $0x8] sm:$0xf]
    %v321 = vld [vmem:[%s7 + $0xc] sm:$0xf]
    %v322 = vld [vmem:[%s7 + $0x10] sm:$0xf]
    %v323 = vld [vmem:[%s7 + $0x14] sm:$0xf]
    %v324 = vld [vmem:[%s7 + $0x18] sm:$0xf]
    %v325 = vld [vmem:[%s7 + $0x1c] sm:$0xf]
    %v326 = vld [vmem:[%s7 + $0x20] sm:$0xf]
    %v327 = vld [vmem:[%s7 + $0x24] sm:$0xf]
    %v328 = vld [vmem:[%s7 + $0x28] sm:$0xf]
    %v329 = vld [vmem:[%s7 + $0x2c] sm:$0xf]
    %v330 = vld [vmem:[%s7 + $0x30] sm:$0xf]
    %v331 = vld [vmem:[%s7 + $0x34] sm:$0xf]
    %v332 = vld [vmem:[%s7 + $0x38] sm:$0xf]
    %v333 = vld [vmem:[%s7 + $0x3c] sm:$0xf]
    %v334 = vld [vmem:[%s8] sm:$0x1]
    %v336 = vlaneseq
    %v337 = vshrl.u32 %v336, 7
    %v338 = vsub.s32 0, %v337
    %v339 = vrot.slane %v334, %v338
    %v357 = vunpack.c.l.b16 %v318
    %v358 = vunpack.c.l.b16 %v319
    %v359 = vunpack.c.l.b16 %v320
    %v360 = vunpack.c.l.b16 %v321
    %v361 = vunpack.c.l.b16 %v322
    %v362 = vunpack.c.l.b16 %v323
    %v363 = vunpack.c.l.b16 %v324
    %v364 = vunpack.c.l.b16 %v325
    %v365 = vunpack.c.l.b16 %v326
    %v366 = vunpack.c.l.b16 %v327
    %v367 = vunpack.c.l.b16 %v328
    %v368 = vunpack.c.l.b16 %v329
    %v369 = vunpack.c.l.b16 %v330
    %v370 = vunpack.c.l.b16 %v331
    %v371 = vunpack.c.l.b16 %v332
    %v372 = vunpack.c.l.b16 %v333
    %v373 = vpack.c.b16 %v358, %v357
    %v374 = vpack.c.b16 %v360, %v359
    %v375 = vpack.c.b16 %v362, %v361
    %v376 = vpack.c.b16 %v364, %v363
    %v377 = vpack.c.b16 %v366, %v365
    %v378 = vpack.c.b16 %v368, %v367
    %v379 = vpack.c.b16 %v370, %v369
    %v380 = vpack.c.b16 %v372, %v371
    %389 = vmatprep.subr.bf16.mxu0 0
    %390 = vmatpush1.bf16.msra.mxu0 %v380
    %391 = vmatprep.subr.bf16.mxu0 0
    %392 = vmatpush1.bf16.msra.mxu0 %v379
    %393 = vmatprep.subr.bf16.mxu0 0
    %394 = vmatpush1.bf16.msra.mxu0 %v378
    %395 = vmatprep.subr.bf16.mxu0 0
    %396 = vmatpush1.bf16.msra.mxu0 %v377
    %397 = vmatprep.subr.bf16.mxu0 0
    %398 = vmatpush1.bf16.msra.mxu0 %v376
    %399 = vmatprep.subr.bf16.mxu0 0
    %400 = vmatpush1.bf16.msra.mxu0 %v375
    %401 = vmatprep.subr.bf16.mxu0 0
    %402 = vmatpush1.bf16.msra.mxu0 %v374
    %403 = vmatprep.subr.bf16.mxu0 0
    %404 = vmatpush1.bf16.msra.mxu0 %v373
    %405 = vmatprep.subr.bf16.mxu0 0
    %406 = vmatpush2.bf16.msra.mxu0 0
    %407 = vmatprep.subr.bf16.mxu0 0
    %408 = vmatpush2.bf16.msra.mxu0 0
    %409 = vmatprep.subr.bf16.mxu0 0
    %410 = vmatpush2.bf16.msra.mxu0 0
    %411 = vmatprep.subr.bf16.mxu0 0
    %412 = vmatpush2.bf16.msra.mxu0 0
    %413 = vmatprep.subr.bf16.mxu0 0
    %414 = vmatpush2.bf16.msra.mxu0 0
    %415 = vmatprep.subr.bf16.mxu0 0
    %416 = vmatpush2.bf16.msra.mxu0 0
    %417 = vmatprep.subr.bf16.mxu0 0
    %418 = vmatpush2.bf16.msra.mxu0 0
    %419 = vmatprep.subr.bf16.mxu0 0
    %420 = vmatpush2.bf16.msra.mxu0 0
    %421 = vmatprep.mubr.bf16.mxu0 0
    %422 = vmatmul.mubr.bf16.gmra.mxu0 %v317
    %v423 = vpop.f32.mrf.mxu0
    %v424 = vadd.f32 %v339, %v423
    %v425 = vpop.f32.mrf.mxu0
    %v426 = vpop.f32.mrf.mxu0
    %v427 = vpop.f32.mrf.mxu0
    %428 = vdwg.mxu0
    %vm429 = vcmask 31744
    %430 = vst.msk [vmem:[%s9] sm:$0xff] %vm429, %v424
    // Predicated region
    $region50: #{inverse_model_forward.1} parent=1 // pred_check
      _
    $region51: #{inverse_model_forward.1} parent=1 // pred_check_branch
      %432 = sbr.rel (0) target = $region53
    $region52: #{inverse_model_forward.1} parent=1 // pred_region
      _
    $region53: #{inverse_model_forward.1} parent=1 // pred_fallthru
      _
    // Predicated region
    $region54: #{inverse_model_forward.1} parent=1 // pred_check
      _
    $region55: #{inverse_model_forward.1} parent=1 // pred_check_branch
      %434 = sbr.rel (0) target = $region57
    $region56: #{inverse_model_forward.1} parent=1 // pred_region
      _
    $region57: #{inverse_model_forward.1} parent=1 // pred_fallthru
      _
    %435 = vsyncpa [#allocation3], 1
    %436 = vsyncpa [#allocation5], 1

</llo_original>
